<compile_context>
chip_gen: v7x
topology: tpu7x:2x2x1
jax: 0.10.0
libtpu: 0.0.40
codegen_flags: <defaults>
</compile_context>

<pallas_src>
import functools

import numpy as np
import jax
import jax.numpy as jnp
from jax import lax
from jax.experimental import pallas as pl
from jax.experimental.pallas import tpu as pltpu

EPS = 1e-5  # nn.GroupNorm default


def _block_kernel(x_ref, w_ref, aff_ref, gsum_ref, gbrd_ref, o_ref, *,
                  chunk, H, W, C_in, C_out, groups):
    """One chunk of `chunk` images per grid step (all lane-dense layouts).

    x_ref:    (chunk, H+2, W*C_in)   H-padded input, (W, C_in) folded into lanes
    w_ref:    (3, W*C_in, W*C_out)   banded conv weights (dx halo folded in)
    aff_ref:  (3, W*C_out)           rows = [conv bias, gamma, beta], tiled over W
    gsum_ref: (W*C_out, groups)      lane -> group one-hot (stats reduce)
    gbrd_ref: (groups, W*C_out)      group -> lane one-hot (stats broadcast)
    o_ref:    (chunk, H, W*C_out)    output slab
    """
    cg = C_out // groups
    WC = W * C_out

    # ---- Conv2d 3x3 (padding=1): three accumulating MXU dots over dy -------
    def lhs(dy):
        if chunk == 1:
            return x_ref[0, dy:dy + H, :]
        return jnp.concatenate(
            [x_ref[i, dy:dy + H, :] for i in range(chunk)], axis=0)

    acc = jnp.dot(lhs(0), w_ref[0], preferred_element_type=jnp.float32)
    acc = acc + jnp.dot(lhs(1), w_ref[1], preferred_element_type=jnp.float32)
    acc = acc + jnp.dot(lhs(2), w_ref[2], preferred_element_type=jnp.float32)
    acc = acc.reshape(chunk, H, WC)                 # (chunk, H, W*C_out) f32

    # ---- GroupNorm (conv bias folded analytically into the stats/affine) ---
    bias_row = aff_ref[0:1, :]                      # (1, WC)
    gamma_row = aff_ref[1:2, :]
    beta_row = aff_ref[2:3, :]

    s = jnp.sum(acc, axis=1)                        # (chunk, WC)
    q = jnp.sum(acc * acc, axis=1)                  # (chunk, WC)
    # stats of (acc + b):  sum' = s + H*b ; sumsq' = q + 2*b*s + H*b^2
    q = q + 2.0 * bias_row * s + float(H) * bias_row * bias_row
    s = s + float(H) * bias_row

    inv_count = 1.0 / float(H * W * cg)             # 1 / elements-per-group
    # One fused matmul for both stats: rows [s; q] -> per-group sums.
    g = jnp.dot(jnp.concatenate([s, q], axis=0), gsum_ref[...],
                preferred_element_type=jnp.float32)          # (2*chunk, groups)
    mean_g = g[:chunk] * inv_count
    var_g = g[chunk:] * inv_count - mean_g * mean_g
    inv_g = lax.rsqrt(var_g + EPS)
    # One fused matmul to broadcast both [mean; inv_std] back onto lanes.
    lanes = jnp.dot(jnp.concatenate([mean_g, inv_g], axis=0), gbrd_ref[...],
                    preferred_element_type=jnp.float32)       # (2*chunk, WC)
    scale = gamma_row * lanes[chunk:]                         # gamma * inv_std
    shift = (bias_row - lanes[:chunk]) * scale + beta_row

    y = acc * scale[:, None, :] + shift[:, None, :]           # (chunk, H, WC)

    # ---- Mish: x*tanh(softplus(x)) = x*(n-1)/(n+1), n = (1+e^x)^2 ----------
    t = jnp.exp(jnp.minimum(y, 20.0))               # single EUP transcendental
    n = (1.0 + t) * (1.0 + t)
    d = n + 1.0
    r = pl.reciprocal(d, approx=True)               # EUP vrcp (free slot)
    r = r * (2.0 - d * r)                           # 1 Newton step -> f32 accurate
    y = y * (n - 1.0) * r

    o_ref[...] = y.astype(o_ref.dtype)


def _banded_weights(w, W):
    """Fold the 3x3 kernel's dx taps and the width halo into a banded matrix:
    B[dy, wi*C_in + c, wo*C_out + o] = w[dy, wi - wo + 1, c, o] (0 off-band),
    so  out[h, wo*C_out + o] = sum_dy  x_hpad[h+dy, :, :]_flat @ B[dy]."""
    KH, KW, C_in, C_out = w.shape
    sel = np.zeros((KW, W, W), np.float32)          # sel[dx, w_out, w_in]
    for dx in range(KW):
        wo = np.arange(W)
        wi = wo + dx - 1
        ok = (wi >= 0) & (wi < W)
        sel[dx, wo[ok], wi[ok]] = 1.0
    b5 = jnp.einsum('xwv,yxco->yvcwo', sel, w)      # (KH, W_in, C_in, W_out, C_out)
    return b5.reshape(KH, W * C_in, W * C_out)


def _pick_chunk(N, H, images_per_step):
    if images_per_step is not None:
        assert N % images_per_step == 0, "images_per_step must divide N"
        return images_per_step
    # Largest divisor of N with M = chunk*H <= 128 that still leaves >=2 grid
    # steps (keep both v7x TensorCores busy) when the batch allows it.
    best = 1
    for d in range(1, N + 1):
        if N % d == 0 and d * H <= 128 and (N // d >= 2 or N == 1):
            best = d
    return best


def block_forward_nhwc(x_nhwc, w, b, gamma, beta, *, groups,
                       mxu_dtype=jnp.bfloat16, images_per_step=None):
    """x_nhwc: (N, H, W, C_in); w: (3, 3, C_in, C_out). Returns (N, H, W, C_out) f32."""
    N, H, W, C_in = x_nhwc.shape
    C_out = w.shape[-1]
    assert C_out % groups == 0
    cg = C_out // groups
    chunk = _pick_chunk(N, H, images_per_step)
    Hp = H + 2
    KC = W * C_in
    WC = W * C_out

    # Only the H halo is materialized; the W halo lives inside the banded weight.
    x_pad = jnp.pad(x_nhwc, ((0, 0), (1, 1), (0, 0), (0, 0)))
    x_flat = x_pad.reshape(N, Hp, KC).astype(mxu_dtype)

    # NOTE: in a real model these are parameter-only and should be built once at init.
    w_band = _banded_weights(w, W).astype(mxu_dtype)              # (3, KC, WC)
    aff = jnp.stack([jnp.tile(b, W), jnp.tile(gamma, W), jnp.tile(beta, W)],
                    axis=0).astype(jnp.float32)                    # (3, WC)
    lane_group = np.tile(np.arange(C_out) // cg, W)                # (WC,)
    onehot = (lane_group[:, None] == np.arange(groups)[None, :]).astype(np.float32)
    gsum = jnp.asarray(onehot)                                     # (WC, groups)
    gbrd = jnp.asarray(onehot.T)                                   # (groups, WC)

    kernel = functools.partial(_block_kernel, chunk=chunk, H=H, W=W,
                               C_in=C_in, C_out=C_out, groups=groups)

    out_flat = pl.pallas_call(
        kernel,
        out_shape=jax.ShapeDtypeStruct((N, H, WC), jnp.float32),
        grid_spec=pltpu.PrefetchScalarGridSpec(
            num_scalar_prefetch=0,
            grid=(N // chunk,),
            in_specs=[
                pl.BlockSpec((chunk, Hp, KC), lambda n: (n, 0, 0)),
                # Constant blocks below; at larger sizes mark the weight
                # pipeline_mode=pl.Buffered(1) and tile WC (see scaling notes).
                pl.BlockSpec((3, KC, WC), lambda n: (0, 0, 0)),
                pl.BlockSpec((3, WC), lambda n: (0, 0)),
                pl.BlockSpec((WC, groups), lambda n: (0, 0)),
                pl.BlockSpec((groups, WC), lambda n: (0, 0)),
            ],
            out_specs=pl.BlockSpec((chunk, H, WC), lambda n: (n, 0, 0)),
        ),
        compiler_params=pltpu.CompilerParams(
            dimension_semantics=("parallel",)),
    )(x_flat, w_band, aff, gsum, gbrd)

    return out_flat.reshape(N, H, W, C_out)


def block_forward(x_nchw, w, b, gamma, beta, *, groups,
                  mxu_dtype=jnp.bfloat16, images_per_step=None):
    """Torch-parity entry point: x_nchw (N, C_in, H, W) -> (N, C_out, H, W)."""
    x_nhwc = jnp.transpose(x_nchw, (0, 2, 3, 1))
    y = block_forward_nhwc(x_nhwc, w, b, gamma, beta, groups=groups,
                           mxu_dtype=mxu_dtype, images_per_step=images_per_step)
    return jnp.transpose(y, (0, 3, 1, 2))


def _reference(x_nchw, w, b, gamma, beta, *, groups):
    """Pure-JAX reference (conv + groupnorm + mish) for correctness check."""
    w_oihw = jnp.transpose(w, (3, 2, 0, 1))
    y = lax.conv_general_dilated(
        x_nchw, w_oihw, window_strides=(1, 1), padding=((1, 1), (1, 1)),
        dimension_numbers=("NCHW", "OIHW", "NCHW"))
    y = y + b[None, :, None, None]
    N, C, H, W = y.shape
    cg = C // groups
    yg = y.reshape(N, groups, cg, H, W)
    mean = jnp.mean(yg, axis=(2, 3, 4), keepdims=True)
    var = jnp.mean((yg - mean) ** 2, axis=(2, 3, 4), keepdims=True)
    yn = ((yg - mean) * lax.rsqrt(var + EPS)).reshape(N, C, H, W)
    yn = yn * gamma[None, :, None, None] + beta[None, :, None, None]
    return yn * jnp.tanh(jax.nn.softplus(yn))


if __name__ == "__main__":
    # Small shapes consistent with Block(dim=4, dim_out=16, groups=8)
    N, C_in, H, W = 2, 4, 16, 16
    C_out, groups = 16, 8

    key = jax.random.PRNGKey(0)
    kx, kw, kb, kg, kbe = jax.random.split(key, 5)

    x = jax.random.normal(kx, (N, C_in, H, W), dtype=jnp.float32)
    w = jax.random.normal(kw, (3, 3, C_in, C_out), dtype=jnp.float32) * 0.1
    b = jax.random.normal(kb, (C_out,), dtype=jnp.float32) * 0.1
    gamma = 1.0 + 0.1 * jax.random.normal(kg, (C_out,), dtype=jnp.float32)
    beta = 0.1 * jax.random.normal(kbe, (C_out,), dtype=jnp.float32)

    ref = _reference(x, w, b, gamma, beta, groups=groups)

    # Default path: bf16 MXU operands (all TPU generations), f32 accumulation.
    out = jax.block_until_ready(block_forward(x, w, b, gamma, beta, groups=groups))
    assert out.shape == (N, C_out, H, W)
    assert jnp.allclose(out, ref, atol=5e-2, rtol=5e-2), "bf16 mismatch vs reference"

    # Strict f32 MXU path (closely matches the torch module numerics).
    out_f32 = jax.block_until_ready(
        block_forward(x, w, b, gamma, beta, groups=groups, mxu_dtype=jnp.float32))
    assert jnp.allclose(out_f32, ref, atol=1e-4, rtol=1e-4), "f32 mismatch vs reference"

    # Multi-image-per-step path (raises MXU M, amortizes per-step overhead).
    out_c2 = jax.block_until_ready(
        block_forward(x, w, b, gamma, beta, groups=groups,
                      mxu_dtype=jnp.float32, images_per_step=2))
    assert jnp.allclose(out_c2, ref, atol=1e-4, rtol=1e-4), "chunked mismatch vs reference"

    print("KERNEL_OK")
</pallas_src>

<mosaic_0001>
module attributes {stable_mosaic.version = 11 : i64} {
  func.func @_block_kernel(%arg0: i32, %arg1: memref<1x18x64xbf16, #tpu.memory_space<vmem>>, %arg2: memref<3x64x256xbf16, #tpu.memory_space<vmem>>, %arg3: memref<3x256xf32, #tpu.memory_space<vmem>>, %arg4: memref<256x8xf32, #tpu.memory_space<vmem>>, %arg5: memref<8x256xf32, #tpu.memory_space<vmem>>, %arg6: memref<1x16x256xf32, #tpu.memory_space<vmem>>) attributes {dimension_semantics = [#tpu.dimension_semantics<parallel>], iteration_bounds = array<i64: 2>, scalar_prefetch = 0 : i64, scratch_operands = 0 : i64, tpu.core_type = #tpu.core_type<tc>, window_params = [{transform_indices = @transform_0, window_bounds = array<i64: 1, 18, 64>}, {pipeline_mode = #tpu.pipeline_mode<synchronous>, transform_indices = @transform_1, window_bounds = array<i64: 3, 64, 256>}, {pipeline_mode = #tpu.pipeline_mode<synchronous>, transform_indices = @transform_2, window_bounds = array<i64: 3, 256>}, {pipeline_mode = #tpu.pipeline_mode<synchronous>, transform_indices = @transform_3, window_bounds = array<i64: 256, 8>}, {pipeline_mode = #tpu.pipeline_mode<synchronous>, transform_indices = @transform_4, window_bounds = array<i64: 8, 256>}, {transform_indices = @transform_5, window_bounds = array<i64: 1, 16, 256>}]} {
    %c0 = arith.constant 0 : index
    %c0_0 = arith.constant 0 : index
    %c0_1 = arith.constant 0 : index
    %0 = vector.load %arg1[%c0, %c0_0, %c0_1] : memref<1x18x64xbf16, #tpu.memory_space<vmem>>, vector<1x16x64xbf16>
    %1 = vector.shape_cast %0 : vector<1x16x64xbf16> to vector<16x64xbf16>
    %c0_2 = arith.constant 0 : index
    %c0_3 = arith.constant 0 : index
    %c0_4 = arith.constant 0 : index
    %2 = vector.load %arg2[%c0_2, %c0_3, %c0_4] : memref<3x64x256xbf16, #tpu.memory_space<vmem>>, vector<1x64x256xbf16>
    %3 = vector.shape_cast %2 : vector<1x64x256xbf16> to vector<64x256xbf16>
    %cst = arith.constant dense<0.000000e+00> : vector<16x256xf32>
    %4 = tpu.matmul %1, %3, %cst {dimension_numbers = #tpu.dot_dimension_numbers<[1], [0], [0], [1], [0, 0, 1, 1], [], []>} : vector<16x64xbf16>, vector<64x256xbf16>, vector<16x256xf32> -> vector<16x256xf32>
    %c0_5 = arith.constant 0 : index
    %c1 = arith.constant 1 : index
    %c0_6 = arith.constant 0 : index
    %5 = vector.load %arg1[%c0_5, %c1, %c0_6] : memref<1x18x64xbf16, #tpu.memory_space<vmem>>, vector<1x16x64xbf16>
    %6 = vector.shape_cast %5 : vector<1x16x64xbf16> to vector<16x64xbf16>
    %c1_7 = arith.constant 1 : index
    %c0_8 = arith.constant 0 : index
    %c0_9 = arith.constant 0 : index
    %7 = vector.load %arg2[%c1_7, %c0_8, %c0_9] : memref<3x64x256xbf16, #tpu.memory_space<vmem>>, vector<1x64x256xbf16>
    %8 = vector.shape_cast %7 : vector<1x64x256xbf16> to vector<64x256xbf16>
    %cst_10 = arith.constant dense<0.000000e+00> : vector<16x256xf32>
    %9 = tpu.matmul %6, %8, %cst_10 {dimension_numbers = #tpu.dot_dimension_numbers<[1], [0], [0], [1], [0, 0, 1, 1], [], []>} : vector<16x64xbf16>, vector<64x256xbf16>, vector<16x256xf32> -> vector<16x256xf32>
    %10 = arith.addf %4, %9 : vector<16x256xf32>
    %c0_11 = arith.constant 0 : index
    %c2 = arith.constant 2 : index
    %c0_12 = arith.constant 0 : index
    %11 = vector.load %arg1[%c0_11, %c2, %c0_12] : memref<1x18x64xbf16, #tpu.memory_space<vmem>>, vector<1x16x64xbf16>
    %12 = vector.shape_cast %11 : vector<1x16x64xbf16> to vector<16x64xbf16>
    %c2_13 = arith.constant 2 : index
    %c0_14 = arith.constant 0 : index
    %c0_15 = arith.constant 0 : index
    %13 = vector.load %arg2[%c2_13, %c0_14, %c0_15] : memref<3x64x256xbf16, #tpu.memory_space<vmem>>, vector<1x64x256xbf16>
    %14 = vector.shape_cast %13 : vector<1x64x256xbf16> to vector<64x256xbf16>
    %cst_16 = arith.constant dense<0.000000e+00> : vector<16x256xf32>
    %15 = tpu.matmul %12, %14, %cst_16 {dimension_numbers = #tpu.dot_dimension_numbers<[1], [0], [0], [1], [0, 0, 1, 1], [], []>} : vector<16x64xbf16>, vector<64x256xbf16>, vector<16x256xf32> -> vector<16x256xf32>
    %16 = arith.addf %10, %15 : vector<16x256xf32>
    %17 = vector.shape_cast %16 : vector<16x256xf32> to vector<1x16x256xf32>
    %c0_17 = arith.constant 0 : index
    %c0_18 = arith.constant 0 : index
    %18 = vector.load %arg3[%c0_17, %c0_18] : memref<3x256xf32, #tpu.memory_space<vmem>>, vector<1x256xf32>
    %c1_19 = arith.constant 1 : index
    %c0_20 = arith.constant 0 : index
    %19 = vector.load %arg3[%c1_19, %c0_20] : memref<3x256xf32, #tpu.memory_space<vmem>>, vector<1x256xf32>
    %c2_21 = arith.constant 2 : index
    %c0_22 = arith.constant 0 : index
    %20 = vector.load %arg3[%c2_21, %c0_22] : memref<3x256xf32, #tpu.memory_space<vmem>>, vector<1x256xf32>
    %cst_23 = arith.constant dense<0.000000e+00> : vector<1x256xf32>
    %21 = vector.multi_reduction <add>, %17, %cst_23 [1] : vector<1x16x256xf32> to vector<1x256xf32>
    %22 = arith.mulf %17, %17 : vector<1x16x256xf32>
    %cst_24 = arith.constant dense<0.000000e+00> : vector<1x256xf32>
    %23 = vector.multi_reduction <add>, %22, %cst_24 [1] : vector<1x16x256xf32> to vector<1x256xf32>
    %cst_25 = arith.constant 2.000000e+00 : f32
    %24 = vector.broadcast %cst_25 : f32 to vector<1x256xf32>
    %25 = arith.mulf %24, %18 : vector<1x256xf32>
    %26 = arith.mulf %25, %21 : vector<1x256xf32>
    %27 = arith.addf %23, %26 : vector<1x256xf32>
    %cst_26 = arith.constant 1.600000e+01 : f32
    %28 = vector.broadcast %cst_26 : f32 to vector<1x256xf32>
    %29 = arith.mulf %28, %18 : vector<1x256xf32>
    %30 = arith.mulf %29, %18 : vector<1x256xf32>
    %31 = arith.addf %27, %30 : vector<1x256xf32>
    %cst_27 = arith.constant 1.600000e+01 : f32
    %32 = vector.broadcast %cst_27 : f32 to vector<1x256xf32>
    %33 = arith.mulf %32, %18 : vector<1x256xf32>
    %34 = arith.addf %21, %33 : vector<1x256xf32>
    %35 = tpu.concatenate %34, %31 in 0 : vector<1x256xf32>, vector<1x256xf32> -> vector<2x256xf32>
    %c0_28 = arith.constant 0 : index
    %c0_29 = arith.constant 0 : index
    %36 = vector.load %arg4[%c0_28, %c0_29] : memref<256x8xf32, #tpu.memory_space<vmem>>, vector<256x8xf32>
    %cst_30 = arith.constant dense<0.000000e+00> : vector<2x8xf32>
    %37 = tpu.matmul %35, %36, %cst_30 {dimension_numbers = #tpu.dot_dimension_numbers<[1], [0], [0], [1], [0, 0, 1, 1], [], []>} : vector<2x256xf32>, vector<256x8xf32>, vector<2x8xf32> -> vector<2x8xf32>
    %38 = vector.extract_strided_slice %37 {offsets = [0, 0], sizes = [1, 8], strides = [1, 1]} : vector<2x8xf32> to vector<1x8xf32>
    %cst_31 = arith.constant 0.001953125 : f32
    %39 = vector.broadcast %cst_31 : f32 to vector<1x8xf32>
    %40 = arith.mulf %38, %39 : vector<1x8xf32>
    %41 = vector.extract_strided_slice %37 {offsets = [1, 0], sizes = [1, 8], strides = [1, 1]} : vector<2x8xf32> to vector<1x8xf32>
    %cst_32 = arith.constant 0.001953125 : f32
    %42 = vector.broadcast %cst_32 : f32 to vector<1x8xf32>
    %43 = arith.mulf %41, %42 : vector<1x8xf32>
    %44 = arith.mulf %40, %40 : vector<1x8xf32>
    %45 = arith.subf %43, %44 : vector<1x8xf32>
    %cst_33 = arith.constant 9.99999974E-6 : f32
    %46 = vector.broadcast %cst_33 : f32 to vector<1x8xf32>
    %47 = arith.addf %45, %46 : vector<1x8xf32>
    %48 = math.rsqrt %47 : vector<1x8xf32>
    %49 = tpu.concatenate %40, %48 in 0 : vector<1x8xf32>, vector<1x8xf32> -> vector<2x8xf32>
    %c0_34 = arith.constant 0 : index
    %c0_35 = arith.constant 0 : index
    %50 = vector.load %arg5[%c0_34, %c0_35] : memref<8x256xf32, #tpu.memory_space<vmem>>, vector<8x256xf32>
    %cst_36 = arith.constant dense<0.000000e+00> : vector<2x256xf32>
    %51 = tpu.matmul %49, %50, %cst_36 {dimension_numbers = #tpu.dot_dimension_numbers<[1], [0], [0], [1], [0, 0, 1, 1], [], []>} : vector<2x8xf32>, vector<8x256xf32>, vector<2x256xf32> -> vector<2x256xf32>
    %52 = vector.extract_strided_slice %51 {offsets = [1, 0], sizes = [1, 256], strides = [1, 1]} : vector<2x256xf32> to vector<1x256xf32>
    %53 = arith.mulf %19, %52 : vector<1x256xf32>
    %54 = vector.extract_strided_slice %51 {offsets = [0, 0], sizes = [1, 256], strides = [1, 1]} : vector<2x256xf32> to vector<1x256xf32>
    %55 = arith.subf %18, %54 : vector<1x256xf32>
    %56 = arith.mulf %55, %53 : vector<1x256xf32>
    %57 = arith.addf %56, %20 : vector<1x256xf32>
    %58 = vector.shape_cast %53 : vector<1x256xf32> to vector<1x1x256xf32>
    %59 = vector.broadcast %58 : vector<1x1x256xf32> to vector<1x16x256xf32>
    %60 = arith.mulf %17, %59 : vector<1x16x256xf32>
    %61 = vector.shape_cast %57 : vector<1x256xf32> to vector<1x1x256xf32>
    %62 = vector.broadcast %61 : vector<1x1x256xf32> to vector<1x16x256xf32>
    %63 = arith.addf %60, %62 : vector<1x16x256xf32>
    %cst_37 = arith.constant 2.000000e+01 : f32
    %64 = vector.broadcast %cst_37 : f32 to vector<1x16x256xf32>
    %65 = arith.minimumf %63, %64 : vector<1x16x256xf32>
    %66 = math.exp %65 : vector<1x16x256xf32>
    %cst_38 = arith.constant 1.000000e+00 : f32
    %67 = vector.broadcast %cst_38 : f32 to vector<1x16x256xf32>
    %68 = arith.addf %67, %66 : vector<1x16x256xf32>
    %cst_39 = arith.constant 1.000000e+00 : f32
    %69 = vector.broadcast %cst_39 : f32 to vector<1x16x256xf32>
    %70 = arith.addf %69, %66 : vector<1x16x256xf32>
    %71 = arith.mulf %68, %70 : vector<1x16x256xf32>
    %cst_40 = arith.constant 1.000000e+00 : f32
    %72 = vector.broadcast %cst_40 : f32 to vector<1x16x256xf32>
    %73 = arith.addf %71, %72 : vector<1x16x256xf32>
    %74 = tpu.reciprocal %73 {approx = true} : vector<1x16x256xf32> -> vector<1x16x256xf32>
    %75 = arith.mulf %73, %74 : vector<1x16x256xf32>
    %cst_41 = arith.constant 2.000000e+00 : f32
    %76 = vector.broadcast %cst_41 : f32 to vector<1x16x256xf32>
    %77 = arith.subf %76, %75 : vector<1x16x256xf32>
    %78 = arith.mulf %74, %77 : vector<1x16x256xf32>
    %cst_42 = arith.constant 1.000000e+00 : f32
    %79 = vector.broadcast %cst_42 : f32 to vector<1x16x256xf32>
    %80 = arith.subf %71, %79 : vector<1x16x256xf32>
    %81 = arith.mulf %63, %80 : vector<1x16x256xf32>
    %82 = arith.mulf %81, %78 : vector<1x16x256xf32>
    %c0_43 = arith.constant 0 : index
    %c0_44 = arith.constant 0 : index
    %c0_45 = arith.constant 0 : index
    %83 = vector.load %arg6[%c0_43, %c0_44, %c0_45] : memref<1x16x256xf32, #tpu.memory_space<vmem>>, vector<1x16x256xf32>
    tpu.vector_store %arg6[%c0_43, %c0_44, %c0_45], %82 {strides = array<i32>} : memref<1x16x256xf32, #tpu.memory_space<vmem>>, vector<1x16x256xf32>,
    return
  }
  func.func @transform_0(%arg0: i32) -> (i32, i32, i32) {
    %c0_i32 = arith.constant 0 : i32
    %c0_i32_0 = arith.constant 0 : i32
    %c0_i32_1 = arith.constant 0 : i32
    return %arg0, %c0_i32, %c0_i32_0 : i32, i32, i32
  }
  func.func @transform_1(%arg0: i32) -> (i32, i32, i32) {
    %c0_i32 = arith.constant 0 : i32
    %c0_i32_0 = arith.constant 0 : i32
    %c0_i32_1 = arith.constant 0 : i32
    %c0_i32_2 = arith.constant 0 : i32
    return %c0_i32, %c0_i32_0, %c0_i32_1 : i32, i32, i32
  }
  func.func @transform_2(%arg0: i32) -> (i32, i32) {
    %c0_i32 = arith.constant 0 : i32
    %c0_i32_0 = arith.constant 0 : i32
    %c0_i32_1 = arith.constant 0 : i32
    return %c0_i32, %c0_i32_0 : i32, i32
  }
  func.func @transform_3(%arg0: i32) -> (i32, i32) {
    %c0_i32 = arith.constant 0 : i32
    %c0_i32_0 = arith.constant 0 : i32
    %c0_i32_1 = arith.constant 0 : i32
    return %c0_i32, %c0_i32_0 : i32, i32
  }
  func.func @transform_4(%arg0: i32) -> (i32, i32) {
    %c0_i32 = arith.constant 0 : i32
    %c0_i32_0 = arith.constant 0 : i32
    %c0_i32_1 = arith.constant 0 : i32
    return %c0_i32, %c0_i32_0 : i32, i32
  }
  func.func @transform_5(%arg0: i32) -> (i32, i32, i32) {
    %c0_i32 = arith.constant 0 : i32
    %c0_i32_0 = arith.constant 0 : i32
    %c0_i32_1 = arith.constant 0 : i32
    return %arg0, %c0_i32, %c0_i32_0 : i32, i32, i32
  }
}

</mosaic_0001>

<llo_original>
// kernel: tpu_custom_call.1
$region0: #{tpu_custom_call.1}
  #allocation0 [shape = 'u32[]', space=smem, size = 0x4, offset = 0x4, fixed_abs, tag = 'smem constant byte address 0x4 - core index']
  #allocation1 [shape = 'u32[144,128]{1,0:T(1,128)}', space=vmem, size = 0x12000, scoped, tag = 'internal scratch']
  %s0 = inlined_call_operand.vmem [shape: bf16[2,18,64], index: 0, kind: input, shape index: {}]
  %s1 = inlined_call_operand.vmem [shape: bf16[3,64,256], index: 1, kind: input, shape index: {}]
  %s2 = inlined_call_operand.vmem [shape: f32[3,256], index: 2, kind: input, shape index: {}]
  %s3 = inlined_call_operand.vmem [shape: f32[256,8], index: 3, kind: input, shape index: {}]
  %s4 = inlined_call_operand.vmem [shape: f32[8,256], index: 4, kind: input, shape index: {}]
  %s5 = inlined_call_operand.hbm [shape: f32[2,16,256], index: 5, kind: output, shape index: {}]
  %s6 = sld [smem:[#allocation0]]
  $region53: #{tpu_custom_call.1} parent=0
    _
  %s8 = ssub.s32 1, %s6
  %s9 = scalar_select 0, %s8, %s6
  $region1: #{tpu_custom_call.1} parent=0
    #allocation2 [shape = 'u8[32768]{0}', space=vmem, size = 0x8000, scoped, tag = 'output window, operand 0']
    #allocation3 [shape = 's32[2]{0}', space=sflag, size = 0x8, scoped, tag = 'scoped memory for tpu_custom_call.1']
    %10 = vsyncpa [#allocation3], 0
    %s11 = scalar_lea.sflag [#allocation3], 1
    %12 = vsyncpa %s11, 0
    loop: start=0, step=1, limit=4
    $region2: #{tpu_custom_call.1} parent=1 // loop_pre_header
      _
    $region3: #{tpu_custom_call.1} parent=1 // loop_header
      %s14 = sphi 0, %s18
      %p15 = scmp.ge.s32.totalorder %s14, 4
      %s24 = sphi 0, %s26
      %s27 = sphi 0, %s24
      %s28 = sphi 0, %s27
      %s44 = sphi 0, %s28
      %s48 = sphi 0, %s48
      %s50 = sphi 0, %s48
      %s51 = sphi 0, %s50
      %s65 = sphi 0, %s51
      %s69 = sphi 0, %s69
      %s71 = sphi 0, %s69
      %s72 = sphi 0, %s71
      %s86 = sphi 0, %s72
      %s90 = sphi 0, %s90
      %s92 = sphi 0, %s90
      %s93 = sphi 0, %s92
      %s107 = sphi 0, %s93
      %s111 = sphi 0, %s111
      %s113 = sphi 0, %s111
      %s114 = sphi 0, %s113
      %s128 = sphi 0, %s114
      %s134 = sphi 0, %s136
      %s137 = sphi 0, %s134
      %s138 = sphi 0, %s137
      %s154 = sphi 0, %s138
    $region4: #{tpu_custom_call.1} parent=1 // loop_header_branch
      %17 = sbr.rel (%p15) target = $region8
    $region5: #{tpu_custom_call.1} parent=1 // loop_body
      %s19 = ssub.s32 %s14, 1
      %s20 = ssub.s32 %s14, 2
      %s21 = sadd.s32 %s14, 1
      %s22 = ssub.s32 %s14, %s21
      %p23 = scmp.eq.s32.totalorder %s22, 0
      %s25 = sadd.s32 %s24, 1
      %s26 = scalar_select %p23, %s24, %s25
      %p29 = pneg %p23
      %p30 = scmp.eq.s32.totalorder %s14, 1
      %p31 = por %p29, %p30
      %p32 = scmp.ne.s32.totalorder %s24, %s27
      %p33 = scmp.eq.s32.totalorder %s14, 0
      %p34 = por %p32, %p33
      %p35 = scmp.ne.s32.totalorder %s24, %s27
      %p36 = scmp.eq.s32.totalorder %s19, 1
      %p37 = por %p35, %p36
      %p38 = scmp.ne.s32.totalorder %s27, %s28
      %p39 = scmp.eq.s32.totalorder %s19, 0
      %p40 = por %p38, %p39
      %p41 = scmp.ne.s32.totalorder %s27, %s28
      %p42 = scmp.eq.s32.totalorder %s20, 1
      %p43 = por %p41, %p42
      %p45 = scmp.ne.s32.totalorder %s28, %s44
      %p46 = scmp.eq.s32.totalorder %s20, 0
      %p47 = por %p45, %p46
      %s49 = sadd.s32 %s48, 1
      %p52 = scmp.eq.s32.totalorder %s14, 1
      %p53 = scmp.ne.s32.totalorder %s48, %s50
      %p54 = scmp.eq.s32.totalorder %s14, 0
      %p55 = por %p53, %p54
      %p56 = scmp.ne.s32.totalorder %s48, %s50
      %p57 = scmp.eq.s32.totalorder %s19, 1
      %p58 = por %p56, %p57
      %p59 = scmp.ne.s32.totalorder %s50, %s51
      %p60 = scmp.eq.s32.totalorder %s19, 0
      %p61 = por %p59, %p60
      %p62 = scmp.ne.s32.totalorder %s50, %s51
      %p63 = scmp.eq.s32.totalorder %s20, 1
      %p64 = por %p62, %p63
      %p66 = scmp.ne.s32.totalorder %s51, %s65
      %p67 = scmp.eq.s32.totalorder %s20, 0
      %p68 = por %p66, %p67
      %s70 = sadd.s32 %s69, 1
      %p73 = scmp.eq.s32.totalorder %s14, 1
      %p74 = scmp.ne.s32.totalorder %s69, %s71
      %p75 = scmp.eq.s32.totalorder %s14, 0
      %p76 = por %p74, %p75
      %p77 = scmp.ne.s32.totalorder %s69, %s71
      %p78 = scmp.eq.s32.totalorder %s19, 1
      %p79 = por %p77, %p78
      %p80 = scmp.ne.s32.totalorder %s71, %s72
      %p81 = scmp.eq.s32.totalorder %s19, 0
      %p82 = por %p80, %p81
      %p83 = scmp.ne.s32.totalorder %s71, %s72
      %p84 = scmp.eq.s32.totalorder %s20, 1
      %p85 = por %p83, %p84
      %p87 = scmp.ne.s32.totalorder %s72, %s86
      %p88 = scmp.eq.s32.totalorder %s20, 0
      %p89 = por %p87, %p88
      %s91 = sadd.s32 %s90, 1
      %p94 = scmp.eq.s32.totalorder %s14, 1
      %p95 = scmp.ne.s32.totalorder %s90, %s92
      %p96 = scmp.eq.s32.totalorder %s14, 0
      %p97 = por %p95, %p96
      %p98 = scmp.ne.s32.totalorder %s90, %s92
      %p99 = scmp.eq.s32.totalorder %s19, 1
      %p100 = por %p98, %p99
      %p101 = scmp.ne.s32.totalorder %s92, %s93
      %p102 = scmp.eq.s32.totalorder %s19, 0
      %p103 = por %p101, %p102
      %p104 = scmp.ne.s32.totalorder %s92, %s93
      %p105 = scmp.eq.s32.totalorder %s20, 1
      %p106 = por %p104, %p105
      %p108 = scmp.ne.s32.totalorder %s93, %s107
      %p109 = scmp.eq.s32.totalorder %s20, 0
      %p110 = por %p108, %p109
      %s112 = sadd.s32 %s111, 1
      %p115 = scmp.eq.s32.totalorder %s14, 1
      %p116 = scmp.ne.s32.totalorder %s111, %s113
      %p117 = scmp.eq.s32.totalorder %s14, 0
      %p118 = por %p116, %p117
      %p119 = scmp.ne.s32.totalorder %s111, %s113
      %p120 = scmp.eq.s32.totalorder %s19, 1
      %p121 = por %p119, %p120
      %p122 = scmp.ne.s32.totalorder %s113, %s114
      %p123 = scmp.eq.s32.totalorder %s19, 0
      %p124 = por %p122, %p123
      %p125 = scmp.ne.s32.totalorder %s113, %s114
      %p126 = scmp.eq.s32.totalorder %s20, 1
      %p127 = por %p125, %p126
      %p129 = scmp.ne.s32.totalorder %s114, %s128
      %p130 = scmp.eq.s32.totalorder %s20, 0
      %p131 = por %p129, %p130
      %s132 = ssub.s32 %s14, %s21
      %p133 = scmp.eq.s32.totalorder %s132, 0
      %s135 = sadd.s32 %s134, 1
      %s136 = scalar_select %p133, %s134, %s135
      %p139 = pneg %p133
      %p140 = scmp.eq.s32.totalorder %s14, 1
      %p141 = por %p139, %p140
      %p142 = scmp.ne.s32.totalorder %s134, %s137
      %p143 = scmp.eq.s32.totalorder %s14, 0
      %p144 = por %p142, %p143
      %p145 = scmp.ne.s32.totalorder %s134, %s137
      %p146 = scmp.eq.s32.totalorder %s19, 1
      %p147 = por %p145, %p146
      %p148 = scmp.ne.s32.totalorder %s137, %s138
      %p149 = scmp.eq.s32.totalorder %s19, 0
      %p150 = por %p148, %p149
      %p151 = scmp.ne.s32.totalorder %s137, %s138
      %p152 = scmp.eq.s32.totalorder %s20, 1
      %p153 = por %p151, %p152
      %p155 = scmp.ne.s32.totalorder %s138, %s154
      %p156 = scmp.eq.s32.totalorder %s20, 0
      %p157 = por %p155, %p156
      %p158 = scmp.le.s32.totalorder 1, %s14
      %p159 = scmp.lt.s32.totalorder %s14, 3
      %p160 = pnand %p158, %p159
      %p161 = pneg %p160
      // Predicated region
      $region9: #{tpu_custom_call.1} parent=5 // pred_check
        _
      $region10: #{tpu_custom_call.1} parent=5 // pred_check_branch
        %163 = sbr.rel (%p160) target = $region12
      $region11: #{tpu_custom_call.1} parent=5 // pred_region
        %s164 = ssub.s32 %s14, 1
        // Predicated region
        $region13: #{tpu_custom_call.1} parent=11 // pred_check
          %p165 = pneg %p61
        $region14: #{tpu_custom_call.1} parent=11 // pred_check_branch
          %167 = sbr.rel (%p165) target = $region16
        $region15: #{tpu_custom_call.1} parent=11 // pred_region
          _
        $region16: #{tpu_custom_call.1} parent=11 // pred_fallthru
          _
        // Predicated region
        $region17: #{tpu_custom_call.1} parent=11 // pred_check
          %p168 = pneg %p82
        $region18: #{tpu_custom_call.1} parent=11 // pred_check_branch
          %170 = sbr.rel (%p168) target = $region20
        $region19: #{tpu_custom_call.1} parent=11 // pred_region
          _
        $region20: #{tpu_custom_call.1} parent=11 // pred_fallthru
          _
        // Predicated region
        $region21: #{tpu_custom_call.1} parent=11 // pred_check
          %p171 = pneg %p103
        $region22: #{tpu_custom_call.1} parent=11 // pred_check_branch
          %173 = sbr.rel (%p171) target = $region24
        $region23: #{tpu_custom_call.1} parent=11 // pred_region
          _
        $region24: #{tpu_custom_call.1} parent=11 // pred_fallthru
          _
        // Predicated region
        $region25: #{tpu_custom_call.1} parent=11 // pred_check
          %p174 = pneg %p124
        $region26: #{tpu_custom_call.1} parent=11 // pred_check_branch
          %176 = sbr.rel (%p174) target = $region28
        $region27: #{tpu_custom_call.1} parent=11 // pred_region
          _
        $region28: #{tpu_custom_call.1} parent=11 // pred_fallthru
          _
      $region12: #{tpu_custom_call.1} parent=5 // pred_fallthru
        _
      %p177 = scmp.lt.s32.totalorder %s14, 2
      // Predicated region
      $region29: #{tpu_custom_call.1} parent=5 // pred_check
        %p178 = pneg %p177
      $region30: #{tpu_custom_call.1} parent=5 // pred_check_branch
        %180 = sbr.rel (%p178) target = $region32
      $region31: #{tpu_custom_call.1} parent=5 // pred_region
        // Predicated region
        $region33: #{tpu_custom_call.1} parent=31 // pred_check
          %p181 = pneg %p34
        $region34: #{tpu_custom_call.1} parent=31 // pred_check_branch
          %183 = sbr.rel (%p181) target = $region36
        $region35: #{tpu_custom_call.1} parent=31 // pred_region
          %p184 = scmp.lt.s32.totalorder %s14, 1
          %s185 = scalar_select %p184, %s14, 1
          %s186 = smul.addr %s185, 3
          %s187 = smul.addr %s186, 4
          %s188 = scalar_lea.vmem %s0, %s187
        $region36: #{tpu_custom_call.1} parent=31 // pred_fallthru
          _
      $region32: #{tpu_custom_call.1} parent=5 // pred_fallthru
        _
      %p189 = scmp.le.s32.totalorder 1, %s14
      %p190 = scmp.lt.s32.totalorder %s14, 3
      %p191 = pnand %p189, %p190
      %p192 = pneg %p191
      // Predicated region
      $region37: #{tpu_custom_call.1} parent=5 // pred_check
        _
      $region38: #{tpu_custom_call.1} parent=5 // pred_check_branch
        %194 = sbr.rel (%p191) target = $region40
      $region39: #{tpu_custom_call.1} parent=5 // pred_region
        %s195 = ssub.s32 %s14, 1
        %p196 = scmp.lt.s32.totalorder %s19, 1
        %s197 = scalar_select %p196, %s19, 1
        %s198 = smul.addr %s197, 3
        %s199 = smul.addr %s198, 4
        %s200 = scalar_lea.vmem %s0, %s199
        %p201 = pneg %p40
        %p202 = pneg %p37
        %p203 = pneg %p61
        %p204 = pneg %p58
        %p205 = pneg %p82
        %p206 = pneg %p79
        %p207 = pneg %p103
        %p208 = pneg %p100
        %p209 = pneg %p124
        %p210 = pneg %p121
        %p211 = pneg %p150
        %p212 = pneg %p147
        %s213 = sand.u32 %s137, 1
        %s214 = scalar_lea.sflag [#allocation3], %s213
        %s215 = sand.u32 %s137, 1
        %s216 = smul.addr %s215, 32
        %s217 = scalar_lea.vmem [#allocation2], %s216
        %p218 = scmp.lt.s32.totalorder %s19, 1
        %s219 = scalar_select %p218, %s19, 1
        %s220 = smul.addr %s219, 3
        %s221 = smul.addr %s220, 4
        %s222 = scalar_lea.vmem %s0, %s221
        %v224 = vld [vmem:[%s222] sm:$0xf]
        %v225 = vld [vmem:[%s222 + $0x4] sm:$0xf]
        %v226 = vld [vmem:[%s1] sm:$0xff]
        %v227 = vld [vmem:[%s1 + $0x8] sm:$0xff]
        %v228 = vld [vmem:[%s1 + $0x10] sm:$0xff]
        %v229 = vld [vmem:[%s1 + $0x18] sm:$0xff]
        %v230 = vld [vmem:[%s1 + $0x20] sm:$0xff]
        %v231 = vld [vmem:[%s1 + $0x28] sm:$0xff]
        %v232 = vld [vmem:[%s1 + $0x30] sm:$0xff]
        %v233 = vld [vmem:[%s1 + $0x38] sm:$0xff]
        %v234 = vld [vmem:[%s222 + $0x8] sm:$0x1]
        %s235 = scalar_lea.vmem %s1, 64
        %v236 = vld [vmem:[%s235] sm:$0xff]
        %v237 = vld [vmem:[%s235 + $0x8] sm:$0xff]
        %v238 = vld [vmem:[%s235 + $0x10] sm:$0xff]
        %v239 = vld [vmem:[%s235 + $0x18] sm:$0xff]
        %v240 = vld [vmem:[%s235 + $0x20] sm:$0xff]
        %v241 = vld [vmem:[%s235 + $0x28] sm:$0xff]
        %v242 = vld [vmem:[%s235 + $0x30] sm:$0xff]
        %v243 = vld [vmem:[%s235 + $0x38] sm:$0xff]
        %v247 = vunpack.c.l.b16 %v224
        %v248 = vunpack.c.l.b16 %v225
        %v249 = vunpack.c.l.b16 %v234
        %v250 = vpack.c.b16 %v248, %v247
        %v251 = vpack.c.b16 %v249, %v249
        %vm252 = vsmask.f32 7424
        %v254 = vshrl.u32 %v250, 16
        %v256 = vshll.u32 %v250, 16
        %v258 = vrot.slane %v256, 1
        %v259 = vor.u32 %v254, %v258
        %v261 = vshll.u32 %v251, 16
        %v263 = vrot.slane %v261, 1
        %v264 = vsel %vm252, %v259, %v263
        %v273 = vunpack.c.l.b16 %v236
        %v274 = vunpack.c.h.b16 %v236
        %v275 = vunpack.c.l.b16 %v237
        %v276 = vunpack.c.h.b16 %v237
        %v277 = vunpack.c.l.b16 %v238
        %v278 = vunpack.c.h.b16 %v238
        %v279 = vunpack.c.l.b16 %v239
        %v280 = vunpack.c.h.b16 %v239
        %v281 = vunpack.c.l.b16 %v240
        %v282 = vunpack.c.h.b16 %v240
        %v283 = vunpack.c.l.b16 %v241
        %v284 = vunpack.c.h.b16 %v241
        %v285 = vunpack.c.l.b16 %v242
        %v286 = vunpack.c.h.b16 %v242
        %v287 = vunpack.c.l.b16 %v243
        %v288 = vunpack.c.h.b16 %v243
        %v289 = vpack.c.b16 %v275, %v273
        %v290 = vpack.c.b16 %v276, %v274
        %v291 = vpack.c.b16 %v279, %v277
        %v292 = vpack.c.b16 %v280, %v278
        %v293 = vpack.c.b16 %v283, %v281
        %v294 = vpack.c.b16 %v284, %v282
        %v295 = vpack.c.b16 %v287, %v285
        %v296 = vpack.c.b16 %v288, %v286
        %vm305 = vcmask 523264
        %v307 = vsel %vm305, %v264, 0
        %309 = vmatprep.subr.bf16.mxu0 %v290
        %310 = vmatpush1.bf16.msra.mxu0 %v289
        %311 = vmatprep.subr.bf16.mxu0 %v292
        %312 = vmatpush1.bf16.msra.mxu0 %v291
        %313 = vmatprep.subr.bf16.mxu0 %v294
        %314 = vmatpush1.bf16.msra.mxu0 %v293
        %315 = vmatprep.subr.bf16.mxu0 %v296
        %316 = vmatpush1.bf16.msra.mxu0 %v295
        %317 = vmatprep.subr.bf16.mxu0 0
        %318 = vmatpush1.bf16.msra.mxu0 0
        %319 = vmatprep.subr.bf16.mxu0 0
        %320 = vmatpush1.bf16.msra.mxu0 0
        %321 = vmatprep.subr.bf16.mxu0 0
        %322 = vmatpush1.bf16.msra.mxu0 0
        %323 = vmatprep.subr.bf16.mxu0 0
        %324 = vmatpush1.bf16.msra.mxu0 0
        %325 = vmatprep.subr.bf16.mxu0 0
        %326 = vmatpush1.bf16.msra.mxu0 0
        %327 = vmatprep.subr.bf16.mxu0 0
        %328 = vmatpush1.bf16.msra.mxu0 0
        %329 = vmatprep.subr.bf16.mxu0 0
        %330 = vmatpush1.bf16.msra.mxu0 0
        %331 = vmatprep.subr.bf16.mxu0 0
        %332 = vmatpush1.bf16.msra.mxu0 0
        %333 = vmatprep.subr.bf16.mxu0 0
        %334 = vmatpush1.bf16.msra.mxu0 0
        %335 = vmatprep.subr.bf16.mxu0 0
        %336 = vmatpush1.bf16.msra.mxu0 0
        %337 = vmatprep.subr.bf16.mxu0 0
        %338 = vmatpush1.bf16.msra.mxu0 0
        %339 = vmatprep.subr.bf16.mxu0 0
        %340 = vmatpush1.bf16.msra.mxu0 0
        %341 = vmatprep.mubr.bf16.mxu0 0
        %342 = vmatmul.mubr.bf16.gmra.mrb[0].mxu0 %v307
        %v343 = vpop.f32.mrb[0].mxu0
        %v344 = vadd.f32 0.0, %v343
        %v345 = vpop.f32.mrb[0].mxu0
        %v346 = vadd.f32 0.0, %v345
        %v347 = vpop.f32.mrb[0].mxu0
        %v348 = vadd.f32 0.0, %v347
        %v349 = vpop.f32.mrb[0].mxu0
        %v350 = vadd.f32 0.0, %v349
        %351 = vdwg.mxu0
        %v360 = vunpack.c.l.b16 %v226
        %v361 = vunpack.c.h.b16 %v226
        %v362 = vunpack.c.l.b16 %v227
        %v363 = vunpack.c.h.b16 %v227
        %v364 = vunpack.c.l.b16 %v228
        %v365 = vunpack.c.h.b16 %v228
        %v366 = vunpack.c.l.b16 %v229
        %v367 = vunpack.c.h.b16 %v229
        %v368 = vunpack.c.l.b16 %v230
        %v369 = vunpack.c.h.b16 %v230
        %v370 = vunpack.c.l.b16 %v231
        %v371 = vunpack.c.h.b16 %v231
        %v372 = vunpack.c.l.b16 %v232
        %v373 = vunpack.c.h.b16 %v232
        %v374 = vunpack.c.l.b16 %v233
        %v375 = vunpack.c.h.b16 %v233
        %v376 = vpack.c.b16 %v362, %v360
        %v377 = vpack.c.b16 %v363, %v361
        %v378 = vpack.c.b16 %v366, %v364
        %v379 = vpack.c.b16 %v367, %v365
        %v380 = vpack.c.b16 %v370, %v368
        %v381 = vpack.c.b16 %v371, %v369
        %v382 = vpack.c.b16 %v374, %v372
        %v383 = vpack.c.b16 %v375, %v373
        %v392 = vsel %vm305, %v250, 0
        %394 = vmatprep.subr.bf16.mxu0 %v377
        %395 = vmatpush1.bf16.msra.mxu0 %v376
        %396 = vmatprep.subr.bf16.mxu0 %v379
        %397 = vmatpush1.bf16.msra.mxu0 %v378
        %398 = vmatprep.subr.bf16.mxu0 %v381
        %399 = vmatpush1.bf16.msra.mxu0 %v380
        %400 = vmatprep.subr.bf16.mxu0 %v383
        %401 = vmatpush1.bf16.msra.mxu0 %v382
        %402 = vmatprep.subr.bf16.mxu0 0
        %403 = vmatpush1.bf16.msra.mxu0 0
        %404 = vmatprep.subr.bf16.mxu0 0
        %405 = vmatpush1.bf16.msra.mxu0 0
        %406 = vmatprep.subr.bf16.mxu0 0
        %407 = vmatpush1.bf16.msra.mxu0 0
        %408 = vmatprep.subr.bf16.mxu0 0
        %409 = vmatpush1.bf16.msra.mxu0 0
        %410 = vmatprep.subr.bf16.mxu0 0
        %411 = vmatpush1.bf16.msra.mxu0 0
        %412 = vmatprep.subr.bf16.mxu0 0
        %413 = vmatpush1.bf16.msra.mxu0 0
        %414 = vmatprep.subr.bf16.mxu0 0
        %415 = vmatpush1.bf16.msra.mxu0 0
        %416 = vmatprep.subr.bf16.mxu0 0
        %417 = vmatpush1.bf16.msra.mxu0 0
        %418 = vmatprep.subr.bf16.mxu0 0
        %419 = vmatpush1.bf16.msra.mxu0 0
        %420 = vmatprep.subr.bf16.mxu0 0
        %421 = vmatpush1.bf16.msra.mxu0 0
        %422 = vmatprep.subr.bf16.mxu0 0
        %423 = vmatpush1.bf16.msra.mxu0 0
        %424 = vmatprep.subr.bf16.mxu0 0
        %425 = vmatpush1.bf16.msra.mxu0 0
        %426 = vmatprep.mubr.bf16.mxu0 0
        %427 = vmatmul.mubr.bf16.gmra.mrb[0].mxu0 %v392
        %v428 = vpop.f32.mrb[0].mxu0
        %v429 = vadd.f32 %v344, %v428
        %v430 = vpop.f32.mrb[0].mxu0
        %v431 = vadd.f32 %v346, %v430
        %v432 = vpop.f32.mrb[0].mxu0
        %v433 = vadd.f32 %v348, %v432
        %v434 = vpop.f32.mrb[0].mxu0
        %v435 = vadd.f32 %v350, %v434
        %436 = vdwg.mxu0
        %v437 = vld [vmem:[%s222] sm:$0xe]
        %s438 = scalar_lea.vmem %s1, 128
        %v439 = vld [vmem:[%s438] sm:$0xff]
        %v440 = vld [vmem:[%s438 + $0x8] sm:$0xff]
        %v441 = vld [vmem:[%s438 + $0x10] sm:$0xff]
        %v442 = vld [vmem:[%s438 + $0x18] sm:$0xff]
        %v443 = vld [vmem:[%s438 + $0x20] sm:$0xff]
        %v444 = vld [vmem:[%s438 + $0x28] sm:$0xff]
        %v445 = vld [vmem:[%s438 + $0x30] sm:$0xff]
        %v446 = vld [vmem:[%s438 + $0x38] sm:$0xff]
        %v448 = vunpack.c.l.b16 %v437
        %v449 = vpack.c.b16 %v248, %v448
        %vm450 = vcmask 1046528
        %v451 = vrot.slane %v449, 1
        %v452 = vrot.slane %v251, 1
        %v453 = vsel %vm450, %v451, %v452
        %v462 = vunpack.c.l.b16 %v439
        %v463 = vunpack.c.h.b16 %v439
        %v464 = vunpack.c.l.b16 %v440
        %v465 = vunpack.c.h.b16 %v440
        %v466 = vunpack.c.l.b16 %v441
        %v467 = vunpack.c.h.b16 %v441
        %v468 = vunpack.c.l.b16 %v442
        %v469 = vunpack.c.h.b16 %v442
        %v470 = vunpack.c.l.b16 %v443
        %v471 = vunpack.c.h.b16 %v443
        %v472 = vunpack.c.l.b16 %v444
        %v473 = vunpack.c.h.b16 %v444
        %v474 = vunpack.c.l.b16 %v445
        %v475 = vunpack.c.h.b16 %v445
        %v476 = vunpack.c.l.b16 %v446
        %v477 = vunpack.c.h.b16 %v446
        %v478 = vpack.c.b16 %v464, %v462
        %v479 = vpack.c.b16 %v465, %v463
        %v480 = vpack.c.b16 %v468, %v466
        %v481 = vpack.c.b16 %v469, %v467
        %v482 = vpack.c.b16 %v472, %v470
        %v483 = vpack.c.b16 %v473, %v471
        %v484 = vpack.c.b16 %v476, %v474
        %v485 = vpack.c.b16 %v477, %v475
        %v495 = vsel %vm305, %v453, 0
        %497 = vmatprep.subr.bf16.mxu0 %v479
        %498 = vmatpush1.bf16.msra.mxu0 %v478
        %499 = vmatprep.subr.bf16.mxu0 %v481
        %500 = vmatpush1.bf16.msra.mxu0 %v480
        %501 = vmatprep.subr.bf16.mxu0 %v483
        %502 = vmatpush1.bf16.msra.mxu0 %v482
        %503 = vmatprep.subr.bf16.mxu0 %v485
        %504 = vmatpush1.bf16.msra.mxu0 %v484
        %505 = vmatprep.subr.bf16.mxu0 0
        %506 = vmatpush1.bf16.msra.mxu0 0
        %507 = vmatprep.subr.bf16.mxu0 0
        %508 = vmatpush1.bf16.msra.mxu0 0
        %509 = vmatprep.subr.bf16.mxu0 0
        %510 = vmatpush1.bf16.msra.mxu0 0
        %511 = vmatprep.subr.bf16.mxu0 0
        %512 = vmatpush1.bf16.msra.mxu0 0
        %513 = vmatprep.subr.bf16.mxu0 0
        %514 = vmatpush1.bf16.msra.mxu0 0
        %515 = vmatprep.subr.bf16.mxu0 0
        %516 = vmatpush1.bf16.msra.mxu0 0
        %517 = vmatprep.subr.bf16.mxu0 0
        %518 = vmatpush1.bf16.msra.mxu0 0
        %519 = vmatprep.subr.bf16.mxu0 0
        %520 = vmatpush1.bf16.msra.mxu0 0
        %521 = vmatprep.subr.bf16.mxu0 0
        %522 = vmatpush1.bf16.msra.mxu0 0
        %523 = vmatprep.subr.bf16.mxu0 0
        %524 = vmatpush1.bf16.msra.mxu0 0
        %525 = vmatprep.subr.bf16.mxu0 0
        %526 = vmatpush1.bf16.msra.mxu0 0
        %527 = vmatprep.subr.bf16.mxu0 0
        %528 = vmatpush1.bf16.msra.mxu0 0
        %529 = vmatprep.mubr.bf16.mxu0 0
        %530 = vmatmul.mubr.bf16.gmra.mrb[0].mxu0 %v495
        %v531 = vpop.f32.mrb[0].mxu0
        %v532 = vadd.f32 0.0, %v531
        %v533 = vpop.f32.mrb[0].mxu0
        %v534 = vadd.f32 0.0, %v533
        %v535 = vpop.f32.mrb[0].mxu0
        %v536 = vadd.f32 0.0, %v535
        %v537 = vpop.f32.mrb[0].mxu0
        %v538 = vadd.f32 0.0, %v537
        %539 = vdwg.mxu0
        %v540 = vadd.f32 %v429, %v532
        %v541 = vadd.f32 %v431, %v534
        %v542 = vadd.f32 %v433, %v536
        %v543 = vadd.f32 %v435, %v538
        %v544 = vld [vmem:[%s2] ss:$4 sm:$0x3]
        %s545 = scalar_lea.vmem %s2, 1
        %v546 = vld [vmem:[%s545] ss:$4 sm:$0x3]
        %s547 = scalar_lea.vmem %s2, 2
        %v548 = vld [vmem:[%s547] ss:$4 sm:$0x3]
        %v549 = vadd.f32 %v540, %v542
        %v550 = vrot.slane %v549, 4
        %v551 = vadd.f32 %v549, %v550
        %v552 = vrot.slane %v551, 2
        %v553 = vadd.f32 %v551, %v552
        %v554 = vrot.slane %v553, 1
        %v555 = vadd.f32 %v553, %v554
        %v556 = vadd.f32 %v541, %v543
        %v557 = vrot.slane %v556, 4
        %v558 = vadd.f32 %v556, %v557
        %v559 = vrot.slane %v558, 2
        %v560 = vadd.f32 %v558, %v559
        %v561 = vrot.slane %v560, 1
        %v562 = vadd.f32 %v560, %v561
        %v563 = vmul.f32 %v540, %v540
        %v564 = vmul.f32 %v541, %v541
        %v565 = vmul.f32 %v542, %v542
        %v566 = vmul.f32 %v543, %v543
        %v567 = vadd.f32 %v563, %v565
        %v568 = vrot.slane %v567, 4
        %v569 = vadd.f32 %v567, %v568
        %v570 = vrot.slane %v569, 2
        %v571 = vadd.f32 %v569, %v570
        %v572 = vrot.slane %v571, 1
        %v573 = vadd.f32 %v571, %v572
        %v574 = vadd.f32 %v564, %v566
        %v575 = vrot.slane %v574, 4
        %v576 = vadd.f32 %v574, %v575
        %v577 = vrot.slane %v576, 2
        %v578 = vadd.f32 %v576, %v577
        %v579 = vrot.slane %v578, 1
        %v580 = vadd.f32 %v578, %v579
        %v581 = vmul.f32 %v544, 2.0
        %v584 = vcombine.low %v555, %v562
        %v586 = vunpack.c.l.s4 1966171168
        %v587 = vunpack.c.0.s8 %v586
        %v588 = vlaneseq
        %v589 = vshrl.u32 %v588, 7
        %v590 = vsub.s32 %v587, %v589
        %v591 = vrot.slane %v584, %v590
        %v593 = vunpack.c.l.s4 1966171168
        %v594 = vunpack.c.0.s8 %v593
        %v595 = vlaneseq
        %v596 = vshrl.u32 %v595, 7
        %v597 = vsub.s32 %v594, %v596
        %v598 = vrot.slane %v591, %v597
        %v600 = vmul.f32 %v581, %v598
        %v602 = vlaneseq
        %v603 = vshrl.u32 %v602, 7
        %v604 = vsub.s32 0, %v603
        %v605 = vrot.slane %v600, %v604
        %v606 = vlaneseq
        %v607 = vshrl.u32 %v606, 7
        %v608 = vsub.s32 1, %v607
        %v609 = vrot.slane %v600, %v608
        %v612 = vadd.f32 %v573, %v605
        %v613 = vadd.f32 %v580, %v609
        %v614 = vmul.f32 %v544, 16.0
        %v615 = vmul.f32 %v614, %v544
        %v617 = vlaneseq
        %v618 = vshrl.u32 %v617, 7
        %v619 = vsub.s32 0, %v618
        %v620 = vrot.slane %v615, %v619
        %v621 = vlaneseq
        %v622 = vshrl.u32 %v621, 7
        %v623 = vsub.s32 1, %v622
        %v624 = vrot.slane %v615, %v623
        %v627 = vadd.f32 %v612, %v620
        %v628 = vadd.f32 %v613, %v624
        %v630 = vlaneseq
        %v631 = vshrl.u32 %v630, 7
        %v632 = vsub.s32 0, %v631
        %v633 = vrot.slane %v614, %v632
        %v634 = vlaneseq
        %v635 = vshrl.u32 %v634, 7
        %v636 = vsub.s32 1, %v635
        %v637 = vrot.slane %v614, %v636
        %v640 = vadd.f32 %v555, %v633
        %v641 = vadd.f32 %v562, %v637
        %v644 = vrot.slane %v627, 7
        %v645 = vrot.slane %v628, 7
        %vm648 = vcmask 1040384
        %v649 = vsel %vm648, %v640, %v644
        %v650 = vsel %vm648, %v641, %v645
        %v651 = vld [vmem:[%s3] sm:$0xff]
        %v652 = vld [vmem:[%s3 + $0x8] sm:$0xff]
        %v653 = vld [vmem:[%s3 + $0x10] sm:$0xff]
        %v654 = vld [vmem:[%s3 + $0x18] sm:$0xff]
        %v655 = vld [vmem:[%s3 + $0x20] sm:$0xff]
        %v656 = vld [vmem:[%s3 + $0x28] sm:$0xff]
        %v657 = vld [vmem:[%s3 + $0x30] sm:$0xff]
        %v658 = vld [vmem:[%s3 + $0x38] sm:$0xff]
        %v659 = vld [vmem:[%s3 + $0x40] sm:$0xff]
        %v660 = vld [vmem:[%s3 + $0x48] sm:$0xff]
        %v661 = vld [vmem:[%s3 + $0x50] sm:$0xff]
        %v662 = vld [vmem:[%s3 + $0x58] sm:$0xff]
        %v663 = vld [vmem:[%s3 + $0x60] sm:$0xff]
        %v664 = vld [vmem:[%s3 + $0x68] sm:$0xff]
        %v665 = vld [vmem:[%s3 + $0x70] sm:$0xff]
        %v666 = vld [vmem:[%s3 + $0x78] sm:$0xff]
        %v667 = vld [vmem:[%s3 + $0x80] sm:$0xff]
        %v668 = vld [vmem:[%s3 + $0x88] sm:$0xff]
        %v669 = vld [vmem:[%s3 + $0x90] sm:$0xff]
        %v670 = vld [vmem:[%s3 + $0x98] sm:$0xff]
        %v671 = vld [vmem:[%s3 + $0xa0] sm:$0xff]
        %v672 = vld [vmem:[%s3 + $0xa8] sm:$0xff]
        %v673 = vld [vmem:[%s3 + $0xb0] sm:$0xff]
        %v674 = vld [vmem:[%s3 + $0xb8] sm:$0xff]
        %v675 = vld [vmem:[%s3 + $0xc0] sm:$0xff]
        %v676 = vld [vmem:[%s3 + $0xc8] sm:$0xff]
        %v677 = vld [vmem:[%s3 + $0xd0] sm:$0xff]
        %v678 = vld [vmem:[%s3 + $0xd8] sm:$0xff]
        %v679 = vld [vmem:[%s3 + $0xe0] sm:$0xff]
        %v680 = vld [vmem:[%s3 + $0xe8] sm:$0xff]
        %v681 = vld [vmem:[%s3 + $0xf0] sm:$0xff]
        %v682 = vld [vmem:[%s3 + $0xf8] sm:$0xff]
        %683 = vmatprep.subr.mxu0 0.0
        %684 = vmatpush1.msra.mxu0 %v651
        %685 = vmatprep.subr.mxu0 0.0
        %686 = vmatpush1.msra.mxu0 %v652
        %687 = vmatprep.subr.mxu0 0.0
        %688 = vmatpush1.msra.mxu0 %v653
        %689 = vmatprep.subr.mxu0 0.0
        %690 = vmatpush1.msra.mxu0 %v654
        %691 = vmatprep.subr.mxu0 0.0
        %692 = vmatpush1.msra.mxu0 %v655
        %693 = vmatprep.subr.mxu0 0.0
        %694 = vmatpush1.msra.mxu0 %v656
        %695 = vmatprep.subr.mxu0 0.0
        %696 = vmatpush1.msra.mxu0 %v657
        %697 = vmatprep.subr.mxu0 0.0
        %698 = vmatpush1.msra.mxu0 %v658
        %699 = vmatprep.subr.mxu0 0.0
        %700 = vmatpush1.msra.mxu0 %v659
        %701 = vmatprep.subr.mxu0 0.0
        %702 = vmatpush1.msra.mxu0 %v660
        %703 = vmatprep.subr.mxu0 0.0
        %704 = vmatpush1.msra.mxu0 %v661
        %705 = vmatprep.subr.mxu0 0.0
        %706 = vmatpush1.msra.mxu0 %v662
        %707 = vmatprep.subr.mxu0 0.0
        %708 = vmatpush1.msra.mxu0 %v663
        %709 = vmatprep.subr.mxu0 0.0
        %710 = vmatpush1.msra.mxu0 %v664
        %711 = vmatprep.subr.mxu0 0.0
        %712 = vmatpush1.msra.mxu0 %v665
        %713 = vmatprep.subr.mxu0 0.0
        %714 = vmatpush1.msra.mxu0 %v666
        %715 = vmatprep.subr.mxu0 0.0
        %716 = vmatpush1.msra.mxu0 %v667
        %717 = vmatprep.subr.mxu0 0.0
        %718 = vmatpush1.msra.mxu0 %v668
        %719 = vmatprep.subr.mxu0 0.0
        %720 = vmatpush1.msra.mxu0 %v669
        %721 = vmatprep.subr.mxu0 0.0
        %722 = vmatpush1.msra.mxu0 %v670
        %723 = vmatprep.subr.mxu0 0.0
        %724 = vmatpush1.msra.mxu0 %v671
        %725 = vmatprep.subr.mxu0 0.0
        %726 = vmatpush1.msra.mxu0 %v672
        %727 = vmatprep.subr.mxu0 0.0
        %728 = vmatpush1.msra.mxu0 %v673
        %729 = vmatprep.subr.mxu0 0.0
        %730 = vmatpush1.msra.mxu0 %v674
        %731 = vmatprep.subr.mxu0 0.0
        %732 = vmatpush1.msra.mxu0 %v675
        %733 = vmatprep.subr.mxu0 0.0
        %734 = vmatpush1.msra.mxu0 %v676
        %735 = vmatprep.subr.mxu0 0.0
        %736 = vmatpush1.msra.mxu0 %v677
        %737 = vmatprep.subr.mxu0 0.0
        %738 = vmatpush1.msra.mxu0 %v678
        %739 = vmatprep.subr.mxu0 0.0
        %740 = vmatpush1.msra.mxu0 %v679
        %741 = vmatprep.subr.mxu0 0.0
        %742 = vmatpush1.msra.mxu0 %v680
        %743 = vmatprep.subr.mxu0 0.0
        %744 = vmatpush1.msra.mxu0 %v681
        %745 = vmatprep.subr.mxu0 0.0
        %746 = vmatpush1.msra.mxu0 %v682
        %747 = vmatprep.mubr.f32.mxu0 %v650
        %748 = vmatmul.mubr.f32.gmra.mrb[0].mxu0 %v649
        %v749 = vpop.f32.mrb[0].mxu0
        %v750 = vadd.f32 0.0, %v749
        %v751 = vpop.f32.mrb[0].mxu0
        %752 = vdwg.mxu0
        %v753 = vmul.f32 %v750, 0.001953125
        %v754 = vmul.f32 %v753, %v753
        %v756 = vrot.slane %v754, 7
        %v758 = vsub.f32 %v753, %v756
        %v759 = vadd.f32 %v758, 1e-05
        %v760 = vrsqrt.pop %v759
        %v761 = vsel %vm648, %v753, %v760
        %v762 = vld [vmem:[%s4] sm:$0xff]
        %v763 = vld [vmem:[%s4 + $0x8] sm:$0xff]
        %vm764 = vcmask 64512
        %v766 = vsel %vm764, %v761, 0
        %768 = vmatprep.subr.mxu0 %v763
        %769 = vmatpush1.msra.mxu0 %v762
        %770 = vmatprep.subr.mxu0 0.0
        %771 = vmatpush1.msra.mxu0 0.0
        %772 = vmatprep.subr.mxu0 0.0
        %773 = vmatpush1.msra.mxu0 0.0
        %774 = vmatprep.subr.mxu0 0.0
        %775 = vmatpush1.msra.mxu0 0.0
        %776 = vmatprep.subr.mxu0 0.0
        %777 = vmatpush1.msra.mxu0 0.0
        %778 = vmatprep.subr.mxu0 0.0
        %779 = vmatpush1.msra.mxu0 0.0
        %780 = vmatprep.subr.mxu0 0.0
        %781 = vmatpush1.msra.mxu0 0.0
        %782 = vmatprep.subr.mxu0 0.0
        %783 = vmatpush1.msra.mxu0 0.0
        %784 = vmatprep.subr.mxu0 0.0
        %785 = vmatpush1.msra.mxu0 0.0
        %786 = vmatprep.subr.mxu0 0.0
        %787 = vmatpush1.msra.mxu0 0.0
        %788 = vmatprep.subr.mxu0 0.0
        %789 = vmatpush1.msra.mxu0 0.0
        %790 = vmatprep.subr.mxu0 0.0
        %791 = vmatpush1.msra.mxu0 0.0
        %792 = vmatprep.subr.mxu0 0.0
        %793 = vmatpush1.msra.mxu0 0.0
        %794 = vmatprep.subr.mxu0 0.0
        %795 = vmatpush1.msra.mxu0 0.0
        %796 = vmatprep.subr.mxu0 0.0
        %797 = vmatpush1.msra.mxu0 0.0
        %798 = vmatprep.subr.mxu0 0.0
        %799 = vmatpush1.msra.mxu0 0.0
        %800 = vmatprep.subr.mxu0 0.0
        %801 = vmatpush1.msra.mxu0 0.0
        %802 = vmatprep.subr.mxu0 0.0
        %803 = vmatpush1.msra.mxu0 0.0
        %804 = vmatprep.subr.mxu0 0.0
        %805 = vmatpush1.msra.mxu0 0.0
        %806 = vmatprep.subr.mxu0 0.0
        %807 = vmatpush1.msra.mxu0 0.0
        %808 = vmatprep.subr.mxu0 0.0
        %809 = vmatpush1.msra.mxu0 0.0
        %810 = vmatprep.subr.mxu0 0.0
        %811 = vmatpush1.msra.mxu0 0.0
        %812 = vmatprep.subr.mxu0 0.0
        %813 = vmatpush1.msra.mxu0 0.0
        %814 = vmatprep.subr.mxu0 0.0
        %815 = vmatpush1.msra.mxu0 0.0
        %816 = vmatprep.subr.mxu0 0.0
        %817 = vmatpush1.msra.mxu0 0.0
        %818 = vmatprep.subr.mxu0 0.0
        %819 = vmatpush1.msra.mxu0 0.0
        %820 = vmatprep.subr.mxu0 0.0
        %821 = vmatpush1.msra.mxu0 0.0
        %822 = vmatprep.subr.mxu0 0.0
        %823 = vmatpush1.msra.mxu0 0.0
        %824 = vmatprep.subr.mxu0 0.0
        %825 = vmatpush1.msra.mxu0 0.0
        %826 = vmatprep.subr.mxu0 0.0
        %827 = vmatpush1.msra.mxu0 0.0
        %828 = vmatprep.subr.mxu0 0.0
        %829 = vmatpush1.msra.mxu0 0.0
        %830 = vmatprep.subr.mxu0 0.0
        %831 = vmatpush1.msra.mxu0 0.0
        %832 = vmatprep.mubr.f32.mxu0 0.0
        %833 = vmatmul.mubr.f32.gmra.mrb[0].mxu0 %v766
        %v834 = vpop.f32.mrb[0].mxu0
        %v835 = vadd.f32 0.0, %v834
        %v836 = vpop.f32.mrb[0].mxu0
        %v837 = vadd.f32 0.0, %v836
        %838 = vdwg.mxu0
        %v841 = vcombine.low %v835, %v837
        %v843 = vunpack.c.l.s4 1966171168
        %v844 = vunpack.c.0.s8 %v843
        %v845 = vlaneseq
        %v846 = vshrl.u32 %v845, 7
        %v847 = vsub.s32 %v844, %v846
        %v848 = vrot.slane %v841, %v847
        %v849 = vcombine.high %v848, %v848
        %v851 = vunpack.c.l.s4 1966171168
        %v852 = vunpack.c.0.s8 %v851
        %v853 = vlaneseq
        %v854 = vshrl.u32 %v853, 7
        %v855 = vsub.s32 %v852, %v854
        %v856 = vrot.slane %v849, %v855
        %v858 = vmul.f32 %v546, %v856
        %v860 = vunpack.c.l.s4 1966171168
        %v861 = vunpack.c.0.s8 %v860
        %v862 = vlaneseq
        %v863 = vshrl.u32 %v862, 7
        %v864 = vsub.s32 %v861, %v863
        %v865 = vrot.slane %v848, %v864
        %v867 = vsub.f32 %v544, %v865
        %v868 = vmul.f32 %v867, %v858
        %v869 = vadd.f32 %v868, %v548
        %v871 = vlaneseq
        %v872 = vshrl.u32 %v871, 7
        %v873 = vsub.s32 0, %v872
        %v874 = vrot.slane %v858, %v873
        %v875 = vlaneseq
        %v876 = vshrl.u32 %v875, 7
        %v877 = vsub.s32 1, %v876
        %v878 = vrot.slane %v858, %v877
        %v881 = vmul.f32 %v540, %v874
        %v882 = vmul.f32 %v541, %v878
        %v883 = vmul.f32 %v542, %v874
        %v884 = vmul.f32 %v543, %v878
        %v886 = vlaneseq
        %v887 = vshrl.u32 %v886, 7
        %v888 = vsub.s32 0, %v887
        %v889 = vrot.slane %v869, %v888
        %v890 = vlaneseq
        %v891 = vshrl.u32 %v890, 7
        %v892 = vsub.s32 1, %v891
        %v893 = vrot.slane %v869, %v892
        %v896 = vadd.f32 %v881, %v889
        %v897 = vadd.f32 %v882, %v893
        %v898 = vadd.f32 %v883, %v889
        %v899 = vadd.f32 %v884, %v893
        %v900 = vmin.f32 %v896, 20.0
        %v901 = vmin.f32 %v897, 20.0
        %v902 = vmin.f32 %v898, 20.0
        %v903 = vmin.f32 %v899, 20.0
        %v904 = vmul.f32 %v900, 1.442695
        %v905 = vpow.pop %v904
        %v906 = vmul.f32 %v901, 1.442695
        %v907 = vpow.pop %v906
        %v908 = vmul.f32 %v902, 1.442695
        %v909 = vpow.pop %v908
        %v910 = vmul.f32 %v903, 1.442695
        %v911 = vpow.pop %v910
        %v912 = vadd.f32 %v905, 1.0
        %v913 = vadd.f32 %v907, 1.0
        %v914 = vadd.f32 %v909, 1.0
        %v915 = vadd.f32 %v911, 1.0
        %v916 = vmul.f32 %v912, %v912
        %v917 = vmul.f32 %v913, %v913
        %v918 = vmul.f32 %v914, %v914
        %v919 = vmul.f32 %v915, %v915
        %v920 = vadd.f32 %v916, 1.0
        %v921 = vadd.f32 %v917, 1.0
        %v922 = vadd.f32 %v918, 1.0
        %v923 = vadd.f32 %v919, 1.0
        %v924 = vrcp.pop %v920
        %v925 = vrcp.pop %v921
        %v926 = vrcp.pop %v922
        %v927 = vrcp.pop %v923
        %v928 = vmul.f32 %v920, %v924
        %v929 = vmul.f32 %v921, %v925
        %v930 = vmul.f32 %v922, %v926
        %v931 = vmul.f32 %v923, %v927
        %v932 = vsub.f32 2.0, %v928
        %v933 = vsub.f32 2.0, %v929
        %v934 = vsub.f32 2.0, %v930
        %v935 = vsub.f32 2.0, %v931
        %v936 = vmul.f32 %v924, %v932
        %v937 = vmul.f32 %v925, %v933
        %v938 = vmul.f32 %v926, %v934
        %v939 = vmul.f32 %v927, %v935
        %v940 = vsub.f32 %v916, 1.0
        %v941 = vsub.f32 %v917, 1.0
        %v942 = vsub.f32 %v918, 1.0
        %v943 = vsub.f32 %v919, 1.0
        %v944 = vmul.f32 %v896, %v940
        %v945 = vmul.f32 %v897, %v941
        %v946 = vmul.f32 %v898, %v942
        %v947 = vmul.f32 %v899, %v943
        %v948 = vmul.f32 %v944, %v936
        %v949 = vmul.f32 %v945, %v937
        %v950 = vmul.f32 %v946, %v938
        %v951 = vmul.f32 %v947, %v939
        %952 = vst [vmem:[%s217] sm:$0xff] %v948
        %953 = vst [vmem:[%s217 + $0x8] sm:$0xff] %v949
        %954 = vst [vmem:[%s217 + $0x10] sm:$0xff] %v950
        %955 = vst [vmem:[%s217 + $0x18] sm:$0xff] %v951
        %s956 = sand.u32 %s137, 1
        %s957 = scalar_lea.sflag [#allocation3], %s956
        %s958 = sand.u32 %s137, 1
        %s959 = smul.addr %s958, 32
        %s960 = scalar_lea.vmem [#allocation2], %s959
        // Predicated region
        $region41: #{tpu_custom_call.1} parent=39 // pred_check
          %p961 = pneg %p147
        $region42: #{tpu_custom_call.1} parent=39 // pred_check_branch
          %963 = sbr.rel (%p961) target = $region44
        $region43: #{tpu_custom_call.1} parent=39 // pred_region
          %s965 = ssub.s32 512, 512
          %966 = vsyncadd %s957, %s965
          %s967 = smul.addr %s19, 4
          %s968 = smul.addr %s967, 128
          %s969 = scalar_lea.hbm %s5, %s968
          %s970 = sshll.u32 %s960, 4
          %s971 = int_to_ptr.vmem [resolvable:$true] %s970
          %976 = dma.vmem_to_hbm [thread:$0]  %s971, 512, %s969, %s957, 256, 256, 16
        $region44: #{tpu_custom_call.1} parent=39 // pred_fallthru
          _
      $region40: #{tpu_custom_call.1} parent=5 // pred_fallthru
        _
      %p977 = scmp.le.s32.totalorder 2, %s14
      // Predicated region
      $region45: #{tpu_custom_call.1} parent=5 // pred_check
        %p978 = pneg %p977
      $region46: #{tpu_custom_call.1} parent=5 // pred_check_branch
        %980 = sbr.rel (%p978) target = $region48
      $region47: #{tpu_custom_call.1} parent=5 // pred_region
        %s981 = ssub.s32 %s14, 2
        // Predicated region
        $region49: #{tpu_custom_call.1} parent=47 // pred_check
          %p982 = pneg %p153
        $region50: #{tpu_custom_call.1} parent=47 // pred_check_branch
          %984 = sbr.rel (%p982) target = $region52
        $region51: #{tpu_custom_call.1} parent=47 // pred_region
          %s985 = sand.u32 %s138, 1
          %s986 = scalar_lea.sflag [#allocation3], %s985
          %s987 = sand.u32 %s138, 1
          %s988 = smul.addr %s987, 32
          %s989 = scalar_lea.vmem [#allocation2], %s988
          %990 = dma.done %s986, 512
        $region52: #{tpu_custom_call.1} parent=47 // pred_fallthru
          _
      $region48: #{tpu_custom_call.1} parent=5 // pred_fallthru
        _
    $region6: #{tpu_custom_call.1} parent=1 // loop_footer
      %s18 = sadd.s32 1, %s14
    $region7: #{tpu_custom_call.1} parent=1 // loop_footer_branch
      %13 = sbr.rel target = $region3
    $region8: #{tpu_custom_call.1} parent=1 // loop_exit
      _
    %991 = vsyncpa [#allocation3], 1
    %s992 = scalar_lea.sflag [#allocation3], 1
    %993 = vsyncpa %s992, 1

</llo_original>
